<compile_context>
chip_gen: v5e
topology: v5e:2x2
jax: 0.10.0
libtpu: 0.0.40
codegen_flags: <defaults>
</compile_context>

<pallas_src>
import jax
import jax.numpy as jnp
from jax import lax
from jax.experimental import pallas as pl
from jax.experimental.pallas import tpu as pltpu


def _round_up(x, m):
    return (x + m - 1) // m * m


def _make_rnn_kernel(chunk, n_chunks, tail_valid, hoist_whh):
    """Chunked tanh-RNN recurrence kernel.

    Refs (inputs, then outputs):
      xp_ref : (chunk, Bt, Hp) bf16  precomputed x_t @ W_ih^T + (b_ih + b_hh), time-major
      whh_ref: (Hp, Hp)        bf16  W_hh^T, resident across the grid
      h0_ref : (Bt, Hp)        f32   initial hidden state for this batch tile, resident
      out_ref: (chunk, Bt, Hp) bf16  per-step hidden states, TIME-MAJOR (dense stores)
      hN_ref : (Bt, Hp)        f32   hidden-state carry across time chunks == final hidden
    """

    def rnn_kernel(xp_ref, whh_ref, h0_ref, out_ref, hN_ref):
        c = pl.program_id(1)  # time-chunk index (sequential axis)

        @pl.when(c == 0)
        def _():
            hN_ref[...] = h0_ref[...]

        # Hoist W_hh^T into vregs only when small enough not to spill across the
        # fully unrolled chunk; otherwise stream it from VMEM each step.
        whh = whh_ref[...] if hoist_whh else None

        def run_chunk(n_steps):
            h = hN_ref[...]  # (Bt, Hp) f32 carry, kept live across the unrolled steps
            for t in range(n_steps):
                w = whh if hoist_whh else whh_ref[...]
                # bf16 MXU operands, f32 accumulate; add + tanh in f32 (v5e-safe).
                h = jnp.tanh(
                    xp_ref[t].astype(jnp.float32)
                    + jnp.dot(h.astype(jnp.bfloat16), w,
                              preferred_element_type=jnp.float32)
                )
                out_ref[t] = h.astype(out_ref.dtype)  # one dense (Bt, Hp) store per step
            hN_ref[...] = h

        if tail_valid == chunk:
            # chunk divides T: single unmasked hot path for every chunk.
            run_chunk(chunk)
        elif n_chunks == 1:
            # Only one (partial) chunk: statically shorter loop, no masking needed.
            run_chunk(tail_valid)
        else:
            # Full chunks take the unmasked path; only the last chunk runs the shorter
            # loop.  Padded output rows are never written (cropped in the wrapper).
            @pl.when(c < n_chunks - 1)
            def _():
                run_chunk(chunk)

            @pl.when(c == n_chunks - 1)
            def _():
                run_chunk(tail_valid)

    return rnn_kernel


def encoder_forward(inputs, hidden, params, *, chunk_cap=64):
    """inputs: int32 (B, T) token ids; hidden: f32 (1, B, H).

    Returns (output (B, T, H), hidden (1, B, H)) matching torch nn.RNN(batch_first=True).
    """
    B, T = inputs.shape
    H = params["embedding"].shape[1]

    # ---- glue (plain JAX): time-major embedding gather + hoisted bulk input GEMM ----
    emb_tm = jnp.take(params["embedding"], inputs.T, axis=0)          # (T, B, H) f32
    bias = (params["b_ih"] + params["b_hh"]).astype(jnp.float32)      # (H,)
    x_proj = (
        jnp.dot(
            emb_tm.reshape(T * B, H).astype(jnp.bfloat16),
            params["w_ih"].T.astype(jnp.bfloat16),
            preferred_element_type=jnp.float32,
        )
        + bias
    ).reshape(T, B, H)                                                # (T, B, H) f32

    # ---- tiling / padding ----
    H_pad = _round_up(H, 128)                     # lane dim -> multiple of 128
    Bt = min(_round_up(B, 8), 256)                # batch tile: >=8 sublanes, fills 256-wide MXU
    B_pad = _round_up(B, Bt)                      # rounded to a multiple of Bt (no dropped rows)
    nb = B_pad // Bt                              # >=2 for large B -> shards across v7x cores
    chunk = T if T <= chunk_cap else chunk_cap    # time steps per grid iteration
    T_pad = _round_up(T, chunk)
    nc = T_pad // chunk
    tail_valid = T - (nc - 1) * chunk             # valid steps in the last chunk

    # Streamed operands in bf16; pad directly (no zeros().at[].set round trip).
    xp = jnp.pad(x_proj.astype(jnp.bfloat16),
                 ((0, T_pad - T), (0, B_pad - B), (0, H_pad - H)))
    whh_t = jnp.pad(params["w_hh"].T,
                    ((0, H_pad - H), (0, H_pad - H))).astype(jnp.bfloat16)
    h0 = jnp.pad(hidden[0].astype(jnp.float32),
                 ((0, B_pad - B), (0, H_pad - H)))

    hoist_whh = (H_pad <= 128) and (chunk <= 64)

    # VMEM budget (double-buffered) so the v7x 64 MiB physical limit is respected.
    bytes_xp = chunk * Bt * H_pad * 2
    bytes_out = chunk * Bt * H_pad * 2
    bytes_whh = H_pad * H_pad * 2
    bytes_h = Bt * H_pad * 4
    vmem_bytes = 2 * (bytes_xp + bytes_out + bytes_whh + 2 * bytes_h) + (1 << 20)
    vmem_bytes = int(min(max(vmem_bytes, 32 << 20), 64 << 20))

    kernel = _make_rnn_kernel(chunk, nc, tail_valid, hoist_whh)

    out_pad, hN_pad = pl.pallas_call(
        kernel,
        out_shape=(
            jax.ShapeDtypeStruct((T_pad, B_pad, H_pad), jnp.bfloat16),  # time-major slab
            jax.ShapeDtypeStruct((B_pad, H_pad), jnp.float32),          # final hidden / carry
        ),
        grid_spec=pltpu.PrefetchScalarGridSpec(
            num_scalar_prefetch=0,
            grid=(nb, nc),
            in_specs=[
                pl.BlockSpec((chunk, Bt, H_pad), lambda b, c: (c, b, 0)),  # x_proj chunk
                pl.BlockSpec((H_pad, H_pad), lambda b, c: (0, 0)),         # W_hh^T (resident)
                pl.BlockSpec((Bt, H_pad), lambda b, c: (b, 0)),            # h0     (resident)
            ],
            out_specs=[
                pl.BlockSpec((chunk, Bt, H_pad), lambda b, c: (c, b, 0)),  # output (time-major)
                pl.BlockSpec((Bt, H_pad), lambda b, c: (b, 0)),            # carry / final hidden
            ],
        ),
        compiler_params=pltpu.CompilerParams(
            dimension_semantics=("parallel", "arbitrary"),  # batch parallel, time sequential
            vmem_limit_bytes=vmem_bytes,
        ),
    )(xp, whh_t, h0)

    # Relayout once in the wrapper (XLA): crop padding, (T, B, H) -> (B, T, H), back to f32.
    output = jnp.transpose(out_pad[:T, :B, :H], (1, 0, 2)).astype(jnp.float32)
    hidden_n = hN_pad[:B, :H][None]                                   # (1, B, H)
    return output, hidden_n


def encoder_reference(inputs, hidden, params):
    """Pure-JAX f32 reference (mirrors torch semantics) for correctness check."""
    emb = jnp.take(params["embedding"], inputs, axis=0)               # (B, T, H)
    h0 = hidden[0]
    wih_t = params["w_ih"].T
    whh_t = params["w_hh"].T

    def step(h, x_t):
        h_new = jnp.tanh(
            jnp.dot(x_t, wih_t, precision=lax.Precision.HIGHEST) + params["b_ih"]
            + jnp.dot(h, whh_t, precision=lax.Precision.HIGHEST) + params["b_hh"]
        )
        return h_new, h_new

    x_tm = jnp.transpose(emb, (1, 0, 2))                              # (T, B, H)
    h_last, ys = lax.scan(step, h0, x_tm)
    return jnp.transpose(ys, (1, 0, 2)), h_last[None]


def make_params(key, input_size, hidden_size):
    k1, k2, k3, k4, k5 = jax.random.split(key, 5)
    s = 1.0 / jnp.sqrt(hidden_size)
    return {
        "embedding": jax.random.uniform(k1, (input_size, hidden_size), jnp.float32, -1.0, 1.0),
        "w_ih": jax.random.uniform(k2, (hidden_size, hidden_size), jnp.float32, -s, s),
        "w_hh": jax.random.uniform(k3, (hidden_size, hidden_size), jnp.float32, -s, s),
        "b_ih": jax.random.uniform(k4, (hidden_size,), jnp.float32, -s, s),
        "b_hh": jax.random.uniform(k5, (hidden_size,), jnp.float32, -s, s),
    }


if __name__ == "__main__":
    INPUT_SIZE = 16     # vocab size
    HIDDEN = 32
    B, T = 2, 8

    key = jax.random.PRNGKey(0)
    kp, ki, kh = jax.random.split(key, 3)

    params = make_params(kp, INPUT_SIZE, HIDDEN)
    inputs = jax.random.randint(ki, (B, T), 0, INPUT_SIZE, dtype=jnp.int32)
    hidden0 = jax.random.normal(kh, (1, B, HIDDEN), jnp.float32)

    output, hidden_n = encoder_forward(inputs, hidden0, params)
    jax.block_until_ready((output, hidden_n))

    ref_out, ref_h = encoder_reference(inputs, hidden0, params)
    assert output.shape == (B, T, HIDDEN) and hidden_n.shape == (1, B, HIDDEN)
    # bf16 MXU operands (f32 accumulate/carry) -> tolerance widened accordingly.
    assert jnp.allclose(output, ref_out, atol=3e-2, rtol=3e-2)
    assert jnp.allclose(hidden_n, ref_h, atol=3e-2, rtol=3e-2)

    print("KERNEL_OK")
</pallas_src>

<mosaic_0001>
module attributes {stable_mosaic.version = 11 : i64} {
  func.func @rnn_kernel(%arg0: i32, %arg1: i32, %arg2: memref<8x8x128xbf16, #tpu.memory_space<vmem>>, %arg3: memref<128x128xbf16, #tpu.memory_space<vmem>>, %arg4: memref<8x128xf32, #tpu.memory_space<vmem>>, %arg5: memref<8x8x128xbf16, #tpu.memory_space<vmem>>, %arg6: memref<8x128xf32, #tpu.memory_space<vmem>>) attributes {dimension_semantics = [#tpu.dimension_semantics<parallel>, #tpu.dimension_semantics<arbitrary>], iteration_bounds = array<i64: 1, 1>, scalar_prefetch = 0 : i64, scratch_operands = 0 : i64, tpu.core_type = #tpu.core_type<tc>, window_params = [{transform_indices = @transform_0, window_bounds = array<i64: 8, 8, 128>}, {pipeline_mode = #tpu.pipeline_mode<synchronous>, transform_indices = @transform_1, window_bounds = array<i64: 128, 128>}, {transform_indices = @transform_2, window_bounds = array<i64: 8, 128>}, {transform_indices = @transform_3, window_bounds = array<i64: 8, 8, 128>}, {transform_indices = @transform_4, window_bounds = array<i64: 8, 128>}]} {
    %c0_i32 = arith.constant 0 : i32
    %0 = arith.cmpi eq, %arg1, %c0_i32 : i32
    %1 = arith.extui %0 : i1 to i32
    %c0_i32_0 = arith.constant 0 : i32
    %2 = arith.cmpi ne, %1, %c0_i32_0 : i32
    scf.if %2 {
      %c0_54 = arith.constant 0 : index
      %c0_55 = arith.constant 0 : index
      %94 = vector.load %arg4[%c0_54, %c0_55] : memref<8x128xf32, #tpu.memory_space<vmem>>, vector<8x128xf32>
      %c0_56 = arith.constant 0 : index
      %c0_57 = arith.constant 0 : index
      %95 = vector.load %arg6[%c0_56, %c0_57] : memref<8x128xf32, #tpu.memory_space<vmem>>, vector<8x128xf32>
      tpu.vector_store %arg6[%c0_56, %c0_57], %94 {strides = array<i32>} : memref<8x128xf32, #tpu.memory_space<vmem>>, vector<8x128xf32>,
    } else {
    }
    %c0 = arith.constant 0 : index
    %c0_1 = arith.constant 0 : index
    %3 = vector.load %arg3[%c0, %c0_1] : memref<128x128xbf16, #tpu.memory_space<vmem>>, vector<128x128xbf16>
    %c0_2 = arith.constant 0 : index
    %c0_3 = arith.constant 0 : index
    %4 = vector.load %arg6[%c0_2, %c0_3] : memref<8x128xf32, #tpu.memory_space<vmem>>, vector<8x128xf32>
    %c0_4 = arith.constant 0 : index
    %c0_5 = arith.constant 0 : index
    %c0_6 = arith.constant 0 : index
    %5 = vector.load %arg2[%c0_4, %c0_5, %c0_6] : memref<8x8x128xbf16, #tpu.memory_space<vmem>>, vector<1x8x128xbf16>
    %6 = vector.shape_cast %5 : vector<1x8x128xbf16> to vector<8x128xbf16>
    %7 = arith.extf %6 : vector<8x128xbf16> to vector<8x128xf32>
    %8 = arith.truncf %4 : vector<8x128xf32> to vector<8x128xbf16>
    %cst = arith.constant dense<0.000000e+00> : vector<8x128xf32>
    %9 = tpu.matmul %8, %3, %cst {dimension_numbers = #tpu.dot_dimension_numbers<[1], [0], [0], [1], [0, 0, 1, 1], [], []>} : vector<8x128xbf16>, vector<128x128xbf16>, vector<8x128xf32> -> vector<8x128xf32>
    %10 = arith.addf %7, %9 : vector<8x128xf32>
    %11 = math.tanh %10 : vector<8x128xf32>
    %12 = arith.truncf %11 : vector<8x128xf32> to vector<8x128xbf16>
    %c0_7 = arith.constant 0 : index
    %c0_8 = arith.constant 0 : index
    %c0_9 = arith.constant 0 : index
    %13 = vector.load %arg5[%c0_7, %c0_8, %c0_9] : memref<8x8x128xbf16, #tpu.memory_space<vmem>>, vector<1x8x128xbf16>
    %14 = vector.shape_cast %13 : vector<1x8x128xbf16> to vector<8x128xbf16>
    %15 = vector.shape_cast %12 : vector<8x128xbf16> to vector<1x8x128xbf16>
    tpu.vector_store %arg5[%c0_7, %c0_8, %c0_9], %15 {strides = array<i32>} : memref<8x8x128xbf16, #tpu.memory_space<vmem>>, vector<1x8x128xbf16>,
    %c1 = arith.constant 1 : index
    %c0_10 = arith.constant 0 : index
    %c0_11 = arith.constant 0 : index
    %16 = vector.load %arg2[%c1, %c0_10, %c0_11] : memref<8x8x128xbf16, #tpu.memory_space<vmem>>, vector<1x8x128xbf16>
    %17 = vector.shape_cast %16 : vector<1x8x128xbf16> to vector<8x128xbf16>
    %18 = arith.extf %17 : vector<8x128xbf16> to vector<8x128xf32>
    %19 = arith.truncf %11 : vector<8x128xf32> to vector<8x128xbf16>
    %cst_12 = arith.constant dense<0.000000e+00> : vector<8x128xf32>
    %20 = tpu.matmul %19, %3, %cst_12 {dimension_numbers = #tpu.dot_dimension_numbers<[1], [0], [0], [1], [0, 0, 1, 1], [], []>} : vector<8x128xbf16>, vector<128x128xbf16>, vector<8x128xf32> -> vector<8x128xf32>
    %21 = arith.addf %18, %20 : vector<8x128xf32>
    %22 = math.tanh %21 : vector<8x128xf32>
    %23 = arith.truncf %22 : vector<8x128xf32> to vector<8x128xbf16>
    %c1_13 = arith.constant 1 : index
    %c0_14 = arith.constant 0 : index
    %c0_15 = arith.constant 0 : index
    %24 = vector.load %arg5[%c1_13, %c0_14, %c0_15] : memref<8x8x128xbf16, #tpu.memory_space<vmem>>, vector<1x8x128xbf16>
    %25 = vector.shape_cast %24 : vector<1x8x128xbf16> to vector<8x128xbf16>
    %26 = vector.shape_cast %23 : vector<8x128xbf16> to vector<1x8x128xbf16>
    tpu.vector_store %arg5[%c1_13, %c0_14, %c0_15], %26 {strides = array<i32>} : memref<8x8x128xbf16, #tpu.memory_space<vmem>>, vector<1x8x128xbf16>,
    %c2 = arith.constant 2 : index
    %c0_16 = arith.constant 0 : index
    %c0_17 = arith.constant 0 : index
    %27 = vector.load %arg2[%c2, %c0_16, %c0_17] : memref<8x8x128xbf16, #tpu.memory_space<vmem>>, vector<1x8x128xbf16>
    %28 = vector.shape_cast %27 : vector<1x8x128xbf16> to vector<8x128xbf16>
    %29 = arith.extf %28 : vector<8x128xbf16> to vector<8x128xf32>
    %30 = arith.truncf %22 : vector<8x128xf32> to vector<8x128xbf16>
    %cst_18 = arith.constant dense<0.000000e+00> : vector<8x128xf32>
    %31 = tpu.matmul %30, %3, %cst_18 {dimension_numbers = #tpu.dot_dimension_numbers<[1], [0], [0], [1], [0, 0, 1, 1], [], []>} : vector<8x128xbf16>, vector<128x128xbf16>, vector<8x128xf32> -> vector<8x128xf32>
    %32 = arith.addf %29, %31 : vector<8x128xf32>
    %33 = math.tanh %32 : vector<8x128xf32>
    %34 = arith.truncf %33 : vector<8x128xf32> to vector<8x128xbf16>
    %c2_19 = arith.constant 2 : index
    %c0_20 = arith.constant 0 : index
    %c0_21 = arith.constant 0 : index
    %35 = vector.load %arg5[%c2_19, %c0_20, %c0_21] : memref<8x8x128xbf16, #tpu.memory_space<vmem>>, vector<1x8x128xbf16>
    %36 = vector.shape_cast %35 : vector<1x8x128xbf16> to vector<8x128xbf16>
    %37 = vector.shape_cast %34 : vector<8x128xbf16> to vector<1x8x128xbf16>
    tpu.vector_store %arg5[%c2_19, %c0_20, %c0_21], %37 {strides = array<i32>} : memref<8x8x128xbf16, #tpu.memory_space<vmem>>, vector<1x8x128xbf16>,
    %c3 = arith.constant 3 : index
    %c0_22 = arith.constant 0 : index
    %c0_23 = arith.constant 0 : index
    %38 = vector.load %arg2[%c3, %c0_22, %c0_23] : memref<8x8x128xbf16, #tpu.memory_space<vmem>>, vector<1x8x128xbf16>
    %39 = vector.shape_cast %38 : vector<1x8x128xbf16> to vector<8x128xbf16>
    %40 = arith.extf %39 : vector<8x128xbf16> to vector<8x128xf32>
    %41 = arith.truncf %33 : vector<8x128xf32> to vector<8x128xbf16>
    %cst_24 = arith.constant dense<0.000000e+00> : vector<8x128xf32>
    %42 = tpu.matmul %41, %3, %cst_24 {dimension_numbers = #tpu.dot_dimension_numbers<[1], [0], [0], [1], [0, 0, 1, 1], [], []>} : vector<8x128xbf16>, vector<128x128xbf16>, vector<8x128xf32> -> vector<8x128xf32>
    %43 = arith.addf %40, %42 : vector<8x128xf32>
    %44 = math.tanh %43 : vector<8x128xf32>
    %45 = arith.truncf %44 : vector<8x128xf32> to vector<8x128xbf16>
    %c3_25 = arith.constant 3 : index
    %c0_26 = arith.constant 0 : index
    %c0_27 = arith.constant 0 : index
    %46 = vector.load %arg5[%c3_25, %c0_26, %c0_27] : memref<8x8x128xbf16, #tpu.memory_space<vmem>>, vector<1x8x128xbf16>
    %47 = vector.shape_cast %46 : vector<1x8x128xbf16> to vector<8x128xbf16>
    %48 = vector.shape_cast %45 : vector<8x128xbf16> to vector<1x8x128xbf16>
    tpu.vector_store %arg5[%c3_25, %c0_26, %c0_27], %48 {strides = array<i32>} : memref<8x8x128xbf16, #tpu.memory_space<vmem>>, vector<1x8x128xbf16>,
    %c4 = arith.constant 4 : index
    %c0_28 = arith.constant 0 : index
    %c0_29 = arith.constant 0 : index
    %49 = vector.load %arg2[%c4, %c0_28, %c0_29] : memref<8x8x128xbf16, #tpu.memory_space<vmem>>, vector<1x8x128xbf16>
    %50 = vector.shape_cast %49 : vector<1x8x128xbf16> to vector<8x128xbf16>
    %51 = arith.extf %50 : vector<8x128xbf16> to vector<8x128xf32>
    %52 = arith.truncf %44 : vector<8x128xf32> to vector<8x128xbf16>
    %cst_30 = arith.constant dense<0.000000e+00> : vector<8x128xf32>
    %53 = tpu.matmul %52, %3, %cst_30 {dimension_numbers = #tpu.dot_dimension_numbers<[1], [0], [0], [1], [0, 0, 1, 1], [], []>} : vector<8x128xbf16>, vector<128x128xbf16>, vector<8x128xf32> -> vector<8x128xf32>
    %54 = arith.addf %51, %53 : vector<8x128xf32>
    %55 = math.tanh %54 : vector<8x128xf32>
    %56 = arith.truncf %55 : vector<8x128xf32> to vector<8x128xbf16>
    %c4_31 = arith.constant 4 : index
    %c0_32 = arith.constant 0 : index
    %c0_33 = arith.constant 0 : index
    %57 = vector.load %arg5[%c4_31, %c0_32, %c0_33] : memref<8x8x128xbf16, #tpu.memory_space<vmem>>, vector<1x8x128xbf16>
    %58 = vector.shape_cast %57 : vector<1x8x128xbf16> to vector<8x128xbf16>
    %59 = vector.shape_cast %56 : vector<8x128xbf16> to vector<1x8x128xbf16>
    tpu.vector_store %arg5[%c4_31, %c0_32, %c0_33], %59 {strides = array<i32>} : memref<8x8x128xbf16, #tpu.memory_space<vmem>>, vector<1x8x128xbf16>,
    %c5 = arith.constant 5 : index
    %c0_34 = arith.constant 0 : index
    %c0_35 = arith.constant 0 : index
    %60 = vector.load %arg2[%c5, %c0_34, %c0_35] : memref<8x8x128xbf16, #tpu.memory_space<vmem>>, vector<1x8x128xbf16>
    %61 = vector.shape_cast %60 : vector<1x8x128xbf16> to vector<8x128xbf16>
    %62 = arith.extf %61 : vector<8x128xbf16> to vector<8x128xf32>
    %63 = arith.truncf %55 : vector<8x128xf32> to vector<8x128xbf16>
    %cst_36 = arith.constant dense<0.000000e+00> : vector<8x128xf32>
    %64 = tpu.matmul %63, %3, %cst_36 {dimension_numbers = #tpu.dot_dimension_numbers<[1], [0], [0], [1], [0, 0, 1, 1], [], []>} : vector<8x128xbf16>, vector<128x128xbf16>, vector<8x128xf32> -> vector<8x128xf32>
    %65 = arith.addf %62, %64 : vector<8x128xf32>
    %66 = math.tanh %65 : vector<8x128xf32>
    %67 = arith.truncf %66 : vector<8x128xf32> to vector<8x128xbf16>
    %c5_37 = arith.constant 5 : index
    %c0_38 = arith.constant 0 : index
    %c0_39 = arith.constant 0 : index
    %68 = vector.load %arg5[%c5_37, %c0_38, %c0_39] : memref<8x8x128xbf16, #tpu.memory_space<vmem>>, vector<1x8x128xbf16>
    %69 = vector.shape_cast %68 : vector<1x8x128xbf16> to vector<8x128xbf16>
    %70 = vector.shape_cast %67 : vector<8x128xbf16> to vector<1x8x128xbf16>
    tpu.vector_store %arg5[%c5_37, %c0_38, %c0_39], %70 {strides = array<i32>} : memref<8x8x128xbf16, #tpu.memory_space<vmem>>, vector<1x8x128xbf16>,
    %c6 = arith.constant 6 : index
    %c0_40 = arith.constant 0 : index
    %c0_41 = arith.constant 0 : index
    %71 = vector.load %arg2[%c6, %c0_40, %c0_41] : memref<8x8x128xbf16, #tpu.memory_space<vmem>>, vector<1x8x128xbf16>
    %72 = vector.shape_cast %71 : vector<1x8x128xbf16> to vector<8x128xbf16>
    %73 = arith.extf %72 : vector<8x128xbf16> to vector<8x128xf32>
    %74 = arith.truncf %66 : vector<8x128xf32> to vector<8x128xbf16>
    %cst_42 = arith.constant dense<0.000000e+00> : vector<8x128xf32>
    %75 = tpu.matmul %74, %3, %cst_42 {dimension_numbers = #tpu.dot_dimension_numbers<[1], [0], [0], [1], [0, 0, 1, 1], [], []>} : vector<8x128xbf16>, vector<128x128xbf16>, vector<8x128xf32> -> vector<8x128xf32>
    %76 = arith.addf %73, %75 : vector<8x128xf32>
    %77 = math.tanh %76 : vector<8x128xf32>
    %78 = arith.truncf %77 : vector<8x128xf32> to vector<8x128xbf16>
    %c6_43 = arith.constant 6 : index
    %c0_44 = arith.constant 0 : index
    %c0_45 = arith.constant 0 : index
    %79 = vector.load %arg5[%c6_43, %c0_44, %c0_45] : memref<8x8x128xbf16, #tpu.memory_space<vmem>>, vector<1x8x128xbf16>
    %80 = vector.shape_cast %79 : vector<1x8x128xbf16> to vector<8x128xbf16>
    %81 = vector.shape_cast %78 : vector<8x128xbf16> to vector<1x8x128xbf16>
    tpu.vector_store %arg5[%c6_43, %c0_44, %c0_45], %81 {strides = array<i32>} : memref<8x8x128xbf16, #tpu.memory_space<vmem>>, vector<1x8x128xbf16>,
    %c7 = arith.constant 7 : index
    %c0_46 = arith.constant 0 : index
    %c0_47 = arith.constant 0 : index
    %82 = vector.load %arg2[%c7, %c0_46, %c0_47] : memref<8x8x128xbf16, #tpu.memory_space<vmem>>, vector<1x8x128xbf16>
    %83 = vector.shape_cast %82 : vector<1x8x128xbf16> to vector<8x128xbf16>
    %84 = arith.extf %83 : vector<8x128xbf16> to vector<8x128xf32>
    %85 = arith.truncf %77 : vector<8x128xf32> to vector<8x128xbf16>
    %cst_48 = arith.constant dense<0.000000e+00> : vector<8x128xf32>
    %86 = tpu.matmul %85, %3, %cst_48 {dimension_numbers = #tpu.dot_dimension_numbers<[1], [0], [0], [1], [0, 0, 1, 1], [], []>} : vector<8x128xbf16>, vector<128x128xbf16>, vector<8x128xf32> -> vector<8x128xf32>
    %87 = arith.addf %84, %86 : vector<8x128xf32>
    %88 = math.tanh %87 : vector<8x128xf32>
    %89 = arith.truncf %88 : vector<8x128xf32> to vector<8x128xbf16>
    %c7_49 = arith.constant 7 : index
    %c0_50 = arith.constant 0 : index
    %c0_51 = arith.constant 0 : index
    %90 = vector.load %arg5[%c7_49, %c0_50, %c0_51] : memref<8x8x128xbf16, #tpu.memory_space<vmem>>, vector<1x8x128xbf16>
    %91 = vector.shape_cast %90 : vector<1x8x128xbf16> to vector<8x128xbf16>
    %92 = vector.shape_cast %89 : vector<8x128xbf16> to vector<1x8x128xbf16>
    tpu.vector_store %arg5[%c7_49, %c0_50, %c0_51], %92 {strides = array<i32>} : memref<8x8x128xbf16, #tpu.memory_space<vmem>>, vector<1x8x128xbf16>,
    %c0_52 = arith.constant 0 : index
    %c0_53 = arith.constant 0 : index
    %93 = vector.load %arg6[%c0_52, %c0_53] : memref<8x128xf32, #tpu.memory_space<vmem>>, vector<8x128xf32>
    tpu.vector_store %arg6[%c0_52, %c0_53], %88 {strides = array<i32>} : memref<8x128xf32, #tpu.memory_space<vmem>>, vector<8x128xf32>,
    return
  }
  func.func @transform_0(%arg0: i32, %arg1: i32) -> (i32, i32, i32) {
    %c0_i32 = arith.constant 0 : i32
    %c0_i32_0 = arith.constant 0 : i32
    return %arg1, %arg0, %c0_i32 : i32, i32, i32
  }
  func.func @transform_1(%arg0: i32, %arg1: i32) -> (i32, i32) {
    %c0_i32 = arith.constant 0 : i32
    %c0_i32_0 = arith.constant 0 : i32
    %c0_i32_1 = arith.constant 0 : i32
    return %c0_i32, %c0_i32_0 : i32, i32
  }
  func.func @transform_2(%arg0: i32, %arg1: i32) -> (i32, i32) {
    %c0_i32 = arith.constant 0 : i32
    %c0_i32_0 = arith.constant 0 : i32
    return %arg0, %c0_i32 : i32, i32
  }
  func.func @transform_3(%arg0: i32, %arg1: i32) -> (i32, i32, i32) {
    %c0_i32 = arith.constant 0 : i32
    %c0_i32_0 = arith.constant 0 : i32
    return %arg1, %arg0, %c0_i32 : i32, i32, i32
  }
  func.func @transform_4(%arg0: i32, %arg1: i32) -> (i32, i32) {
    %c0_i32 = arith.constant 0 : i32
    %c0_i32_0 = arith.constant 0 : i32
    return %arg0, %c0_i32 : i32, i32
  }
}

</mosaic_0001>

<llo_original>
// kernel: tpu_custom_call.1
$region0: #{tpu_custom_call.1}
  #allocation0 [shape = 'u32[]', space=smem, size = 0x4, offset = 0x4, fixed_abs, tag = 'smem constant byte address 0x4 - core index']
  #allocation1 [shape = 'u32[72,128]{1,0:T(1,128)}', space=vmem, size = 0x9000, scoped, tag = 'internal scratch']
  %s0 = inlined_call_operand.hbm [shape: bf16[8,8,128], index: 0, kind: input, shape index: {}]
  %s1 = inlined_call_operand.hbm [shape: bf16[128,128], index: 1, kind: input, shape index: {}]
  %s2 = inlined_call_operand.hbm [shape: f32[8,128], index: 2, kind: input, shape index: {}]
  %s3 = inlined_call_operand.hbm [shape: bf16[8,8,128], index: 3, kind: output, shape index: {0}]
  %s4 = inlined_call_operand.hbm [shape: f32[8,128], index: 4, kind: output, shape index: {1}]
  %5 = xla_tuple %s3, %s4
  %s6 = sld [smem:[#allocation0]]
  $region46: #{tpu_custom_call.1} parent=0
    _
  %s8 = ssub.s32 1, %s6
  %s9 = scalar_select 0, %s8, %s6
  $region1: #{tpu_custom_call.1} parent=0
    #allocation2 [shape = 'u8[16384]{0}', space=vmem, size = 0x4000, scoped, tag = 'input window, operand 0, single buffered']
    #allocation3 [shape = 's32[1]{0}', space=sflag, size = 0x4, scoped, tag = 'scoped memory for tpu_custom_call.1']
    #allocation4 [shape = 's32[1]{0}', space=sflag, size = 0x4, scoped, tag = 'scoped memory for tpu_custom_call.1']
    #allocation5 [shape = 'u8[32768]{0}', space=vmem, size = 0x8000, scoped, tag = 'input window, operand 1, single buffered']
    #allocation6 [shape = 's32[1]{0}', space=sflag, size = 0x4, scoped, tag = 'scoped memory for tpu_custom_call.1']
    #allocation7 [shape = 'u8[4096]{0}', space=vmem, size = 0x1000, scoped, tag = 'input window, operand 2, single buffered']
    #allocation8 [shape = 'u8[16384]{0}', space=vmem, size = 0x4000, scoped, tag = 'output window, operand 0, single buffered']
    #allocation9 [shape = 'u8[4096]{0}', space=vmem, size = 0x1000, scoped, tag = 'output window, operand 1, single buffered']
    #allocation10 [shape = 's32[1]{0}', space=sflag, size = 0x4, scoped, tag = 'scoped memory for tpu_custom_call.1']
    %10 = vsyncpa [#allocation3], 0
    %11 = vsyncpa [#allocation6], 0
    %12 = vsyncpa [#allocation4], 0
    %13 = vsyncpa [#allocation10], 0
    // Predicated region
    $region2: #{tpu_custom_call.1} parent=1 // pred_check
      _
    $region3: #{tpu_custom_call.1} parent=1 // pred_check_branch
      %15 = sbr.rel (0) target = $region5
    $region4: #{tpu_custom_call.1} parent=1 // pred_region
      %17 = vsyncadd [#allocation3], 0
      %s18 = sshll.u32 %s0, 4
      %s19 = int_to_ptr.hbm [resolvable:$true] %s18
      %s20 = sshll.u32 [#allocation2], 4
      %s21 = int_to_ptr.vmem [resolvable:$true] %s20
      %26 = dma.hbm_to_vmem [thread:$0]  %s19, 512, %s21, [#allocation3], 64, 64, 4
    $region5: #{tpu_custom_call.1} parent=1 // pred_fallthru
      _
    // Predicated region
    $region6: #{tpu_custom_call.1} parent=1 // pred_check
      _
    $region7: #{tpu_custom_call.1} parent=1 // pred_check_branch
      %28 = sbr.rel (0) target = $region9
    $region8: #{tpu_custom_call.1} parent=1 // pred_region
      %30 = vsyncadd [#allocation6], 0
      %s31 = sshll.u32 %s1, 4
      %s32 = int_to_ptr.hbm [resolvable:$true] %s31
      %s33 = sshll.u32 [#allocation5], 4
      %s34 = int_to_ptr.vmem [resolvable:$true] %s33
      %39 = dma.hbm_to_vmem [thread:$0]  %s32, 1024, %s34, [#allocation6], 64, 64, 4
    $region9: #{tpu_custom_call.1} parent=1 // pred_fallthru
      _
    // Predicated region
    $region10: #{tpu_custom_call.1} parent=1 // pred_check
      _
    $region11: #{tpu_custom_call.1} parent=1 // pred_check_branch
      %41 = sbr.rel (0) target = $region13
    $region12: #{tpu_custom_call.1} parent=1 // pred_region
      %43 = vsyncadd [#allocation6], 0
      %s45 = sshll.u32 %s2, 4
      %s46 = int_to_ptr.hbm [resolvable:$true] %s45
      %s47 = sshll.u32 [#allocation7], 4
      %s48 = int_to_ptr.vmem [resolvable:$true] %s47
      %50 = dma.hbm_to_vmem [thread:$0]  %s46, 128, %s48, [#allocation6]
    $region13: #{tpu_custom_call.1} parent=1 // pred_fallthru
      _
    // Predicated region
    $region14: #{tpu_custom_call.1} parent=1 // pred_check
      _
    $region15: #{tpu_custom_call.1} parent=1 // pred_check_branch
      %52 = sbr.rel (0) target = $region17
    $region16: #{tpu_custom_call.1} parent=1 // pred_region
      %54 = dma.done [#allocation3], 512
    $region17: #{tpu_custom_call.1} parent=1 // pred_fallthru
      _
    // Predicated region
    $region18: #{tpu_custom_call.1} parent=1 // pred_check
      _
    $region19: #{tpu_custom_call.1} parent=1 // pred_check_branch
      %56 = sbr.rel (0) target = $region21
    $region20: #{tpu_custom_call.1} parent=1 // pred_region
      %58 = dma.done [#allocation6], 1024
    $region21: #{tpu_custom_call.1} parent=1 // pred_fallthru
      _
    // Predicated region
    $region22: #{tpu_custom_call.1} parent=1 // pred_check
      _
    $region23: #{tpu_custom_call.1} parent=1 // pred_check_branch
      %60 = sbr.rel (0) target = $region25
    $region24: #{tpu_custom_call.1} parent=1 // pred_region
      %62 = dma.done [#allocation6], 128
    $region25: #{tpu_custom_call.1} parent=1 // pred_fallthru
      _
    %p63 = scmp.eq.s32.totalorder 0, 0
    // Predicated region
    $region26: #{tpu_custom_call.1} parent=1 // pred_check
      %p64 = pneg %p63
    $region27: #{tpu_custom_call.1} parent=1 // pred_check_branch
      %66 = sbr.rel (%p64) target = $region29
    $region28: #{tpu_custom_call.1} parent=1 // pred_region
      %v67 = vld [vmem:[#allocation7] sm:$0xff]
      %68 = vst [vmem:[#allocation9] sm:$0xff] %v67
    $region29: #{tpu_custom_call.1} parent=1 // pred_fallthru
      _
    %v69 = vld [vmem:[#allocation5] sm:$0xf]
    %v70 = vld [vmem:[#allocation5 + $0x4] sm:$0xf]
    %v71 = vld [vmem:[#allocation5 + $0x8] sm:$0xf]
    %v72 = vld [vmem:[#allocation5 + $0xc] sm:$0xf]
    %v73 = vld [vmem:[#allocation5 + $0x10] sm:$0xf]
    %v74 = vld [vmem:[#allocation5 + $0x14] sm:$0xf]
    %v75 = vld [vmem:[#allocation5 + $0x18] sm:$0xf]
    %v76 = vld [vmem:[#allocation5 + $0x1c] sm:$0xf]
    %v77 = vld [vmem:[#allocation5 + $0x20] sm:$0xf]
    %v78 = vld [vmem:[#allocation5 + $0x24] sm:$0xf]
    %v79 = vld [vmem:[#allocation5 + $0x28] sm:$0xf]
    %v80 = vld [vmem:[#allocation5 + $0x2c] sm:$0xf]
    %v81 = vld [vmem:[#allocation5 + $0x30] sm:$0xf]
    %v82 = vld [vmem:[#allocation5 + $0x34] sm:$0xf]
    %v83 = vld [vmem:[#allocation5 + $0x38] sm:$0xf]
    %v84 = vld [vmem:[#allocation5 + $0x3c] sm:$0xf]
    %v85 = vld [vmem:[#allocation9] sm:$0xff]
    %v86 = vld [vmem:[#allocation2] sm:$0xf]
    %v87 = vunpack.c.l.bf16 %v86
    %v88 = vpack.c.bf16 %v85, %v85
    %v105 = vunpack.c.l.b16 %v69
    %v106 = vunpack.c.l.b16 %v70
    %v107 = vunpack.c.l.b16 %v71
    %v108 = vunpack.c.l.b16 %v72
    %v109 = vunpack.c.l.b16 %v73
    %v110 = vunpack.c.l.b16 %v74
    %v111 = vunpack.c.l.b16 %v75
    %v112 = vunpack.c.l.b16 %v76
    %v113 = vunpack.c.l.b16 %v77
    %v114 = vunpack.c.l.b16 %v78
    %v115 = vunpack.c.l.b16 %v79
    %v116 = vunpack.c.l.b16 %v80
    %v117 = vunpack.c.l.b16 %v81
    %v118 = vunpack.c.l.b16 %v82
    %v119 = vunpack.c.l.b16 %v83
    %v120 = vunpack.c.l.b16 %v84
    %v121 = vpack.c.b16 %v106, %v105
    %v122 = vpack.c.b16 %v108, %v107
    %v123 = vpack.c.b16 %v110, %v109
    %v124 = vpack.c.b16 %v112, %v111
    %v125 = vpack.c.b16 %v114, %v113
    %v126 = vpack.c.b16 %v116, %v115
    %v127 = vpack.c.b16 %v118, %v117
    %v128 = vpack.c.b16 %v120, %v119
    %137 = vmatpush.bf16.msra.mxu0 %v128
    %138 = vmatpush.bf16.msra.mxu0 %v127
    %139 = vmatpush.bf16.msra.mxu0 %v126
    %140 = vmatpush.bf16.msra.mxu0 %v125
    %141 = vmatpush.bf16.msra.mxu0 %v124
    %142 = vmatpush.bf16.msra.mxu0 %v123
    %143 = vmatpush.bf16.msra.mxu0 %v122
    %144 = vmatpush.bf16.msra.mxu0 %v121
    %145 = vmatmul.bf16.gmra.mxu0 %v88
    %v146 = vpop.f32.mrf.mxu0
    %v147 = vadd.f32 0.0, %v146
    %v148 = vpop.f32.mrf.mxu0
    %149 = vdwg.mxu0
    %v150 = vadd.f32 %v87, %v147
    %v151 = vtanh.pop %v150
    %v152 = vpack.c.bf16 %v151, %v151
    %153 = vst [vmem:[#allocation8] sm:$0xf] %v152
    %s154 = scalar_lea.vmem [#allocation2], 4
    %v155 = vld [vmem:[%s154] sm:$0xf]
    %v156 = vunpack.c.l.bf16 %v155
    %157 = vmatpush.bf16.msra.mxu0 %v128
    %158 = vmatpush.bf16.msra.mxu0 %v127
    %159 = vmatpush.bf16.msra.mxu0 %v126
    %160 = vmatpush.bf16.msra.mxu0 %v125
    %161 = vmatpush.bf16.msra.mxu0 %v124
    %162 = vmatpush.bf16.msra.mxu0 %v123
    %163 = vmatpush.bf16.msra.mxu0 %v122
    %164 = vmatpush.bf16.msra.mxu0 %v121
    %165 = vmatmul.bf16.gmra.mxu0 %v152
    %v166 = vpop.f32.mrf.mxu0
    %v167 = vadd.f32 0.0, %v166
    %v168 = vpop.f32.mrf.mxu0
    %169 = vdwg.mxu0
    %v170 = vadd.f32 %v156, %v167
    %v171 = vtanh.pop %v170
    %v172 = vpack.c.bf16 %v171, %v171
    %s173 = scalar_lea.vmem [#allocation8], 4
    %174 = vst [vmem:[%s173] sm:$0xf] %v172
    %s175 = scalar_lea.vmem [#allocation2], 8
    %v176 = vld [vmem:[%s175] sm:$0xf]
    %v177 = vunpack.c.l.bf16 %v176
    %178 = vmatpush.bf16.msra.mxu0 %v128
    %179 = vmatpush.bf16.msra.mxu0 %v127
    %180 = vmatpush.bf16.msra.mxu0 %v126
    %181 = vmatpush.bf16.msra.mxu0 %v125
    %182 = vmatpush.bf16.msra.mxu0 %v124
    %183 = vmatpush.bf16.msra.mxu0 %v123
    %184 = vmatpush.bf16.msra.mxu0 %v122
    %185 = vmatpush.bf16.msra.mxu0 %v121
    %186 = vmatmul.bf16.gmra.mxu0 %v172
    %v187 = vpop.f32.mrf.mxu0
    %v188 = vadd.f32 0.0, %v187
    %v189 = vpop.f32.mrf.mxu0
    %190 = vdwg.mxu0
    %v191 = vadd.f32 %v177, %v188
    %v192 = vtanh.pop %v191
    %v193 = vpack.c.bf16 %v192, %v192
    %s194 = scalar_lea.vmem [#allocation8], 8
    %195 = vst [vmem:[%s194] sm:$0xf] %v193
    %s196 = scalar_lea.vmem [#allocation2], 12
    %v197 = vld [vmem:[%s196] sm:$0xf]
    %v198 = vunpack.c.l.bf16 %v197
    %199 = vmatpush.bf16.msra.mxu0 %v128
    %200 = vmatpush.bf16.msra.mxu0 %v127
    %201 = vmatpush.bf16.msra.mxu0 %v126
    %202 = vmatpush.bf16.msra.mxu0 %v125
    %203 = vmatpush.bf16.msra.mxu0 %v124
    %204 = vmatpush.bf16.msra.mxu0 %v123
    %205 = vmatpush.bf16.msra.mxu0 %v122
    %206 = vmatpush.bf16.msra.mxu0 %v121
    %207 = vmatmul.bf16.gmra.mxu0 %v193
    %v208 = vpop.f32.mrf.mxu0
    %v209 = vadd.f32 0.0, %v208
    %v210 = vpop.f32.mrf.mxu0
    %211 = vdwg.mxu0
    %v212 = vadd.f32 %v198, %v209
    %v213 = vtanh.pop %v212
    %v214 = vpack.c.bf16 %v213, %v213
    %s215 = scalar_lea.vmem [#allocation8], 12
    %216 = vst [vmem:[%s215] sm:$0xf] %v214
    %s217 = scalar_lea.vmem [#allocation2], 16
    %v218 = vld [vmem:[%s217] sm:$0xf]
    %v219 = vunpack.c.l.bf16 %v218
    %220 = vmatpush.bf16.msra.mxu0 %v128
    %221 = vmatpush.bf16.msra.mxu0 %v127
    %222 = vmatpush.bf16.msra.mxu0 %v126
    %223 = vmatpush.bf16.msra.mxu0 %v125
    %224 = vmatpush.bf16.msra.mxu0 %v124
    %225 = vmatpush.bf16.msra.mxu0 %v123
    %226 = vmatpush.bf16.msra.mxu0 %v122
    %227 = vmatpush.bf16.msra.mxu0 %v121
    %228 = vmatmul.bf16.gmra.mxu0 %v214
    %v229 = vpop.f32.mrf.mxu0
    %v230 = vadd.f32 0.0, %v229
    %v231 = vpop.f32.mrf.mxu0
    %232 = vdwg.mxu0
    %v233 = vadd.f32 %v219, %v230
    %v234 = vtanh.pop %v233
    %v235 = vpack.c.bf16 %v234, %v234
    %s236 = scalar_lea.vmem [#allocation8], 16
    %237 = vst [vmem:[%s236] sm:$0xf] %v235
    %s238 = scalar_lea.vmem [#allocation2], 20
    %v239 = vld [vmem:[%s238] sm:$0xf]
    %v240 = vunpack.c.l.bf16 %v239
    %241 = vmatpush.bf16.msra.mxu0 %v128
    %242 = vmatpush.bf16.msra.mxu0 %v127
    %243 = vmatpush.bf16.msra.mxu0 %v126
    %244 = vmatpush.bf16.msra.mxu0 %v125
    %245 = vmatpush.bf16.msra.mxu0 %v124
    %246 = vmatpush.bf16.msra.mxu0 %v123
    %247 = vmatpush.bf16.msra.mxu0 %v122
    %248 = vmatpush.bf16.msra.mxu0 %v121
    %249 = vmatmul.bf16.gmra.mxu0 %v235
    %v250 = vpop.f32.mrf.mxu0
    %v251 = vadd.f32 0.0, %v250
    %v252 = vpop.f32.mrf.mxu0
    %253 = vdwg.mxu0
    %v254 = vadd.f32 %v240, %v251
    %v255 = vtanh.pop %v254
    %v256 = vpack.c.bf16 %v255, %v255
    %s257 = scalar_lea.vmem [#allocation8], 20
    %258 = vst [vmem:[%s257] sm:$0xf] %v256
    %s259 = scalar_lea.vmem [#allocation2], 24
    %v260 = vld [vmem:[%s259] sm:$0xf]
    %v261 = vunpack.c.l.bf16 %v260
    %262 = vmatpush.bf16.msra.mxu0 %v128
    %263 = vmatpush.bf16.msra.mxu0 %v127
    %264 = vmatpush.bf16.msra.mxu0 %v126
    %265 = vmatpush.bf16.msra.mxu0 %v125
    %266 = vmatpush.bf16.msra.mxu0 %v124
    %267 = vmatpush.bf16.msra.mxu0 %v123
    %268 = vmatpush.bf16.msra.mxu0 %v122
    %269 = vmatpush.bf16.msra.mxu0 %v121
    %270 = vmatmul.bf16.gmra.mxu0 %v256
    %v271 = vpop.f32.mrf.mxu0
    %v272 = vadd.f32 0.0, %v271
    %v273 = vpop.f32.mrf.mxu0
    %274 = vdwg.mxu0
    %v275 = vadd.f32 %v261, %v272
    %v276 = vtanh.pop %v275
    %v277 = vpack.c.bf16 %v276, %v276
    %s278 = scalar_lea.vmem [#allocation8], 24
    %279 = vst [vmem:[%s278] sm:$0xf] %v277
    %s280 = scalar_lea.vmem [#allocation2], 28
    %v281 = vld [vmem:[%s280] sm:$0xf]
    %v282 = vunpack.c.l.bf16 %v281
    %283 = vmatpush.bf16.msra.mxu0 %v128
    %284 = vmatpush.bf16.msra.mxu0 %v127
    %285 = vmatpush.bf16.msra.mxu0 %v126
    %286 = vmatpush.bf16.msra.mxu0 %v125
    %287 = vmatpush.bf16.msra.mxu0 %v124
    %288 = vmatpush.bf16.msra.mxu0 %v123
    %289 = vmatpush.bf16.msra.mxu0 %v122
    %290 = vmatpush.bf16.msra.mxu0 %v121
    %291 = vmatmul.bf16.gmra.mxu0 %v277
    %v292 = vpop.f32.mrf.mxu0
    %v293 = vadd.f32 0.0, %v292
    %v294 = vpop.f32.mrf.mxu0
    %295 = vdwg.mxu0
    %v296 = vadd.f32 %v282, %v293
    %v297 = vtanh.pop %v296
    %v298 = vpack.c.bf16 %v297, %v297
    %s299 = scalar_lea.vmem [#allocation8], 28
    %300 = vst [vmem:[%s299] sm:$0xf] %v298
    %301 = vst [vmem:[#allocation9] sm:$0xff] %v297
    // Predicated region
    $region30: #{tpu_custom_call.1} parent=1 // pred_check
      _
    $region31: #{tpu_custom_call.1} parent=1 // pred_check_branch
      %303 = sbr.rel (0) target = $region33
    $region32: #{tpu_custom_call.1} parent=1 // pred_region
      %305 = vsyncadd [#allocation4], 0
      %s306 = sshll.u32 [#allocation8], 4
      %s307 = int_to_ptr.vmem [resolvable:$true] %s306
      %s308 = sshll.u32 %s3, 4
      %s309 = int_to_ptr.hbm [resolvable:$true] %s308
      %314 = dma.vmem_to_hbm [thread:$0]  %s307, 512, %s309, [#allocation4], 64, 64, 4
    $region33: #{tpu_custom_call.1} parent=1 // pred_fallthru
      _
    // Predicated region
    $region34: #{tpu_custom_call.1} parent=1 // pred_check
      _
    $region35: #{tpu_custom_call.1} parent=1 // pred_check_branch
      %316 = sbr.rel (0) target = $region37
    $region36: #{tpu_custom_call.1} parent=1 // pred_region
      %318 = vsyncadd [#allocation10], 0
      %s320 = sshll.u32 [#allocation9], 4
      %s321 = int_to_ptr.vmem [resolvable:$true] %s320
      %s322 = sshll.u32 %s4, 4
      %s323 = int_to_ptr.hbm [resolvable:$true] %s322
      %325 = dma.vmem_to_hbm [thread:$0]  %s321, 128, %s323, [#allocation10]
    $region37: #{tpu_custom_call.1} parent=1 // pred_fallthru
      _
    // Predicated region
    $region38: #{tpu_custom_call.1} parent=1 // pred_check
      _
    $region39: #{tpu_custom_call.1} parent=1 // pred_check_branch
      %327 = sbr.rel (0) target = $region41
    $region40: #{tpu_custom_call.1} parent=1 // pred_region
      %329 = dma.done [#allocation4], 512
    $region41: #{tpu_custom_call.1} parent=1 // pred_fallthru
      _
    // Predicated region
    $region42: #{tpu_custom_call.1} parent=1 // pred_check
      _
    $region43: #{tpu_custom_call.1} parent=1 // pred_check_branch
      %331 = sbr.rel (0) target = $region45
    $region44: #{tpu_custom_call.1} parent=1 // pred_region
      %333 = dma.done [#allocation10], 128
    $region45: #{tpu_custom_call.1} parent=1 // pred_fallthru
      _
    %334 = vsyncpa [#allocation3], 1
    %335 = vsyncpa [#allocation6], 1
    %336 = vsyncpa [#allocation4], 1
    %337 = vsyncpa [#allocation10], 1

</llo_original>
